<compile_context>
chip_gen: v7x
topology: tpu7x:2x2x1
jax: 0.10.0
libtpu: 0.0.40
codegen_flags: <defaults>
</compile_context>

<pallas_src>
import jax
import jax.numpy as jnp
from jax.experimental import pallas as pl
from jax.experimental.pallas import tpu as pltpu

_NEG = -1e30  # class-dim padding for x: exp(_NEG - m) == 0, stays finite in f32
_VMEM_INPUT_BUDGET = 12 * 1024 * 1024  # bytes for double-buffered x+target tiles


def _round_up(a, b):
    return (a + b - 1) // b * b


def _soft_target_ce_kernel(x_ref, t_ref, w_ref, o_ref, acc_ref):
    i = pl.program_id(1)  # inner (reduction / "arbitrary") axis

    @pl.when(i == 0)
    def _():
        acc_ref[...] = jnp.zeros_like(acc_ref)

    x = x_ref[...].astype(jnp.float32)        # (TILE_N, C_pad)
    t = t_ref[...].astype(jnp.float32)        # (TILE_N, C_pad)
    w = w_ref[...].astype(jnp.float32)        # (1, C_pad)

    # numerically-stable log_softmax along the class (lane) axis
    m = jnp.max(x, axis=-1, keepdims=True)
    z = x - m
    lse = jnp.log(jnp.sum(jnp.exp(z), axis=-1, keepdims=True))
    logp = z - lse                            # (TILE_N, C_pad)

    # raw (unnormalised) weighted class sums; keep everything 2-D for layout.
    per_row = jnp.sum(-t * logp * w, axis=-1, keepdims=True)   # (TILE_N, 1)
    acc_ref[...] += jnp.sum(per_row, axis=0, keepdims=True)    # (1, 1)

    # single output store, only on the last inner step
    @pl.when(i == pl.num_programs(1) - 1)
    def _():
        o_ref[...] = acc_ref[...].reshape(o_ref.shape)


def soft_target_cross_entropy(x, target, weight, *, tile_n=1024, n_outer=2):
    """x: (N, C), target: (N, C), weight: (C,) -> scalar f32 loss."""
    N, C = x.shape

    # lane-pad the class dim to a multiple of 128
    C_pad = _round_up(max(C, 128), 128)

    # pick the biggest row tile that keeps double-buffered inputs in budget
    bytes_per_row = 2 * 2 * C_pad * 4            # 2 inputs x 2 pipeline buffers
    cap = max(8, (_VMEM_INPUT_BUDGET // bytes_per_row) // 8 * 8)
    tile_n = max(8, (min(tile_n, cap, _round_up(N, 8)) // 8) * 8)

    n_tiles = pl.cdiv(N, tile_n)
    n_outer = max(1, min(n_outer, n_tiles))      # per-TC partials (v7x megacore)
    n_inner = pl.cdiv(n_tiles, n_outer)
    N_pad = n_outer * n_inner * tile_n

    # pad: x with large negative (softmax-neutral on class dim; padded rows are
    # all-constant so still finite), target/weight with 0 (zero contribution)
    x_p = jnp.pad(x, ((0, N_pad - N), (0, C_pad - C)), constant_values=_NEG)
    t_p = jnp.pad(target, ((0, N_pad - N), (0, C_pad - C)))
    w_p = jnp.pad(weight.reshape(1, C), ((0, 0), (0, C_pad - C)))

    row_map = lambda o, i: (o * n_inner + i, 0)

    partials = pl.pallas_call(
        _soft_target_ce_kernel,
        out_shape=jax.ShapeDtypeStruct((n_outer, 1, 1), jnp.float32),
        grid_spec=pltpu.PrefetchScalarGridSpec(
            num_scalar_prefetch=0,
            grid=(n_outer, n_inner),
            in_specs=[
                pl.BlockSpec((tile_n, C_pad), row_map),
                pl.BlockSpec((tile_n, C_pad), row_map),
                pl.BlockSpec((1, C_pad), lambda o, i: (0, 0)),
            ],
            out_specs=pl.BlockSpec((1, 1, 1), lambda o, i: (o, 0, 0)),
            scratch_shapes=[pltpu.VMEM((1, 1), jnp.float32)],
        ),
        compiler_params=pltpu.CompilerParams(
            dimension_semantics=("parallel", "arbitrary")),
        cost_estimate=pl.CostEstimate(
            flops=8 * N_pad * C_pad,
            transcendentals=N_pad * C_pad + N_pad,
            bytes_accessed=(2 * N_pad * C_pad + C_pad) * 4 + n_outer * 4),
    )(x_p, t_p, w_p)

    # hoisted normalisation: * len(weight) / weight.sum(), then batch mean (/N)
    w32 = weight.astype(jnp.float32)
    scale = jnp.float32(C) / (jnp.sum(w32) * jnp.float32(N))
    return jnp.sum(partials) * scale


def _reference(x, target, weight):
    logp = jax.nn.log_softmax(x.astype(jnp.float32), axis=-1)
    w = weight.astype(jnp.float32)
    loss = jnp.sum(
        -target.astype(jnp.float32) * logp * w * (w.shape[0] / jnp.sum(w)), axis=-1
    )
    return jnp.mean(loss)


if __name__ == "__main__":
    N, C = 8, 32  # batch, num_classes
    key = jax.random.PRNGKey(0)
    kx, kt = jax.random.split(key)

    x = jax.random.normal(kx, (N, C), dtype=jnp.float32)
    # soft targets: rows sum to 1
    target = jax.nn.softmax(jax.random.normal(kt, (N, C), dtype=jnp.float32), axis=-1)
    # deterministic positive per-class weights (module's __init__ just stores it)
    weight = (jnp.arange(1, C + 1, dtype=jnp.float32)) / C

    out = soft_target_cross_entropy(x, target, weight)
    out = jax.block_until_ready(out)

    ref = _reference(x, target, weight)
    assert jnp.allclose(out, ref, rtol=1e-5, atol=1e-5), (out, ref)
    print("KERNEL_OK")
</pallas_src>

<mosaic_0001>
module attributes {stable_mosaic.version = 11 : i64} {
  func.func @_soft_target_ce_kernel(%arg0: i32, %arg1: i32, %arg2: memref<8x128xf32, #tpu.memory_space<vmem>>, %arg3: memref<8x128xf32, #tpu.memory_space<vmem>>, %arg4: memref<1x128xf32, #tpu.memory_space<vmem>>, %arg5: memref<1x1x1xf32, #tpu.memory_space<vmem>>, %arg6: memref<1x1xf32, #tpu.memory_space<vmem>>) attributes {dimension_semantics = [#tpu.dimension_semantics<parallel>, #tpu.dimension_semantics<arbitrary>], iteration_bounds = array<i64: 1, 1>, scalar_prefetch = 0 : i64, scratch_operands = 1 : i64, tpu.core_type = #tpu.core_type<tc>, window_params = [{transform_indices = @transform_0, window_bounds = array<i64: 8, 128>}, {transform_indices = @transform_1, window_bounds = array<i64: 8, 128>}, {pipeline_mode = #tpu.pipeline_mode<synchronous>, transform_indices = @transform_2, window_bounds = array<i64: 1, 128>}, {transform_indices = @transform_3, window_bounds = array<i64: 1, 1, 1>}]} {
    %c0_i32 = arith.constant 0 : i32
    %0 = arith.cmpi eq, %arg1, %c0_i32 : i32
    %1 = arith.extui %0 : i1 to i32
    %c0_i32_0 = arith.constant 0 : i32
    %2 = arith.cmpi ne, %1, %c0_i32_0 : i32
    scf.if %2 {
      %cst_16 = arith.constant 0.000000e+00 : f32
      %31 = vector.broadcast %cst_16 : f32 to vector<1x1xf32>
      %c0_17 = arith.constant 0 : index
      %c0_18 = arith.constant 0 : index
      %32 = vector.load %arg6[%c0_17, %c0_18] : memref<1x1xf32, #tpu.memory_space<vmem>>, vector<1x1xf32>
      tpu.vector_store %arg6[%c0_17, %c0_18], %31 {strides = array<i32>} : memref<1x1xf32, #tpu.memory_space<vmem>>, vector<1x1xf32>,
    } else {
    }
    %c0 = arith.constant 0 : index
    %c0_1 = arith.constant 0 : index
    %3 = vector.load %arg2[%c0, %c0_1] : memref<8x128xf32, #tpu.memory_space<vmem>>, vector<8x128xf32>
    %c0_2 = arith.constant 0 : index
    %c0_3 = arith.constant 0 : index
    %4 = vector.load %arg3[%c0_2, %c0_3] : memref<8x128xf32, #tpu.memory_space<vmem>>, vector<8x128xf32>
    %c0_4 = arith.constant 0 : index
    %c0_5 = arith.constant 0 : index
    %5 = vector.load %arg4[%c0_4, %c0_5] : memref<1x128xf32, #tpu.memory_space<vmem>>, vector<1x128xf32>
    %cst = arith.constant dense<0xFF800000> : vector<8xf32>
    %6 = vector.multi_reduction <maximumf>, %3, %cst [1] : vector<8x128xf32> to vector<8xf32>
    %7 = vector.shape_cast %6 : vector<8xf32> to vector<8x1xf32>
    %8 = vector.broadcast %7 : vector<8x1xf32> to vector<8x128xf32>
    %9 = arith.subf %3, %8 : vector<8x128xf32>
    %10 = math.exp %9 : vector<8x128xf32>
    %cst_6 = arith.constant dense<0.000000e+00> : vector<8xf32>
    %11 = vector.multi_reduction <add>, %10, %cst_6 [1] : vector<8x128xf32> to vector<8xf32>
    %12 = vector.shape_cast %11 : vector<8xf32> to vector<8x1xf32>
    %13 = math.log %12 : vector<8x1xf32>
    %14 = vector.broadcast %13 : vector<8x1xf32> to vector<8x128xf32>
    %15 = arith.subf %9, %14 : vector<8x128xf32>
    %cst_7 = arith.constant 0.000000e+00 : f32
    %16 = vector.broadcast %cst_7 : f32 to vector<8x128xf32>
    %17 = arith.subf %16, %4 : vector<8x128xf32>
    %18 = arith.mulf %17, %15 : vector<8x128xf32>
    %19 = vector.broadcast %5 : vector<1x128xf32> to vector<8x128xf32>
    %20 = arith.mulf %18, %19 : vector<8x128xf32>
    %cst_8 = arith.constant dense<0.000000e+00> : vector<8xf32>
    %21 = vector.multi_reduction <add>, %20, %cst_8 [1] : vector<8x128xf32> to vector<8xf32>
    %22 = vector.shape_cast %21 : vector<8xf32> to vector<8x1xf32>
    %c0_9 = arith.constant 0 : index
    %c0_10 = arith.constant 0 : index
    %23 = vector.load %arg6[%c0_9, %c0_10] : memref<1x1xf32, #tpu.memory_space<vmem>>, vector<1x1xf32>
    %cst_11 = arith.constant dense<0.000000e+00> : vector<1xf32>
    %24 = vector.multi_reduction <add>, %22, %cst_11 [0] : vector<8x1xf32> to vector<1xf32>
    %25 = vector.shape_cast %24 : vector<1xf32> to vector<1x1xf32>
    %26 = arith.addf %23, %25 : vector<1x1xf32>
    %c0_12 = arith.constant 0 : index
    %c0_13 = arith.constant 0 : index
    %27 = vector.load %arg6[%c0_12, %c0_13] : memref<1x1xf32, #tpu.memory_space<vmem>>, vector<1x1xf32>
    tpu.vector_store %arg6[%c0_12, %c0_13], %26 {strides = array<i32>} : memref<1x1xf32, #tpu.memory_space<vmem>>, vector<1x1xf32>,
    %c0_i32_14 = arith.constant 0 : i32
    %28 = arith.cmpi eq, %arg1, %c0_i32_14 : i32
    %29 = arith.extui %28 : i1 to i32
    %c0_i32_15 = arith.constant 0 : i32
    %30 = arith.cmpi ne, %29, %c0_i32_15 : i32
    scf.if %30 {
      %c0_16 = arith.constant 0 : index
      %c0_17 = arith.constant 0 : index
      %31 = vector.load %arg6[%c0_16, %c0_17] : memref<1x1xf32, #tpu.memory_space<vmem>>, vector<1x1xf32>
      %32 = vector.shape_cast %31 : vector<1x1xf32> to vector<1x1x1xf32>
      %c0_18 = arith.constant 0 : index
      %c0_19 = arith.constant 0 : index
      %c0_20 = arith.constant 0 : index
      %33 = vector.load %arg5[%c0_18, %c0_19, %c0_20] : memref<1x1x1xf32, #tpu.memory_space<vmem>>, vector<1x1x1xf32>
      tpu.vector_store %arg5[%c0_18, %c0_19, %c0_20], %32 {strides = array<i32>} : memref<1x1x1xf32, #tpu.memory_space<vmem>>, vector<1x1x1xf32>,
    } else {
    }
    return
  }
  func.func @transform_0(%arg0: i32, %arg1: i32) -> (i32, i32) {
    %c1_i32 = arith.constant 1 : i32
    %0 = arith.muli %arg0, %c1_i32 : i32
    %1 = arith.addi %0, %arg1 : i32
    %c0_i32 = arith.constant 0 : i32
    %c0_i32_0 = arith.constant 0 : i32
    return %1, %c0_i32 : i32, i32
  }
  func.func @transform_1(%arg0: i32, %arg1: i32) -> (i32, i32) {
    %c1_i32 = arith.constant 1 : i32
    %0 = arith.muli %arg0, %c1_i32 : i32
    %1 = arith.addi %0, %arg1 : i32
    %c0_i32 = arith.constant 0 : i32
    %c0_i32_0 = arith.constant 0 : i32
    return %1, %c0_i32 : i32, i32
  }
  func.func @transform_2(%arg0: i32, %arg1: i32) -> (i32, i32) {
    %c0_i32 = arith.constant 0 : i32
    %c0_i32_0 = arith.constant 0 : i32
    %c0_i32_1 = arith.constant 0 : i32
    return %c0_i32, %c0_i32_0 : i32, i32
  }
  func.func @transform_3(%arg0: i32, %arg1: i32) -> (i32, i32, i32) {
    %c0_i32 = arith.constant 0 : i32
    %c0_i32_0 = arith.constant 0 : i32
    %c0_i32_1 = arith.constant 0 : i32
    return %arg0, %c0_i32, %c0_i32_0 : i32, i32, i32
  }
}

</mosaic_0001>

<llo_original>
// kernel: tpu_custom_call.1
$region0: #{tpu_custom_call.1}
  #allocation0 [shape = 'u32[]', space=smem, size = 0x4, offset = 0x4, fixed_abs, tag = 'smem constant byte address 0x4 - core index']
  #allocation1 [shape = 'u32[144,128]{1,0:T(1,128)}', space=vmem, size = 0x12000, scoped, tag = 'internal scratch']
  #allocation2 [shape = 'f32[1,1]{1,0:T(1,128)}', space=vmem, size = 0x200, scoped, tag = 'scratch operand']
  %s0 = inlined_call_operand.hbm [shape: f32[8,128], index: 0, kind: input, shape index: {}]
  %s1 = inlined_call_operand.hbm [shape: f32[8,128], index: 1, kind: input, shape index: {}]
  %s2 = inlined_call_operand.vmem [shape: f32[1,128], index: 2, kind: input, shape index: {}]
  %s3 = inlined_call_operand.hbm [shape: f32[1,1,1], index: 3, kind: output, shape index: {}]
  %s4 = sld [smem:[#allocation0]]
  $region38: #{tpu_custom_call.1} parent=0
    _
  %s6 = ssub.s32 1, %s4
  %s7 = scalar_select 0, %s6, %s4
  $region1: #{tpu_custom_call.1} parent=0
    #allocation3 [shape = 'u8[4096]{0}', space=vmem, size = 0x1000, scoped, tag = 'input window, operand 0, single buffered']
    #allocation4 [shape = 's32[1]{0}', space=sflag, size = 0x4, scoped, tag = 'scoped memory for tpu_custom_call.1']
    #allocation5 [shape = 's32[1]{0}', space=sflag, size = 0x4, scoped, tag = 'scoped memory for tpu_custom_call.1']
    #allocation6 [shape = 'u8[4096]{0}', space=vmem, size = 0x1000, scoped, tag = 'input window, operand 1, single buffered']
    #allocation7 [shape = 's32[1]{0}', space=sflag, size = 0x4, scoped, tag = 'scoped memory for tpu_custom_call.1']
    #allocation8 [shape = 'u8[512]{0}', space=vmem, size = 0x400, scoped, tag = 'output window, operand 0, single buffered']
    %8 = vsyncpa [#allocation4], 0
    %9 = vsyncpa [#allocation7], 0
    %10 = vsyncpa [#allocation5], 0
    // Predicated region
    $region2: #{tpu_custom_call.1} parent=1 // pred_check
      _
    $region3: #{tpu_custom_call.1} parent=1 // pred_check_branch
      %12 = sbr.rel (0) target = $region5
    $region4: #{tpu_custom_call.1} parent=1 // pred_region
      %s13 = sadd.s32 0, 0
      %s15 = ssub.s32 128, 128
      %16 = vsyncadd [#allocation4], %s15
      %s17 = smul.addr %s13, 128
      %s18 = scalar_lea.hbm %s0, %s17
      %s20 = sshll.u32 [#allocation3], 4
      %s21 = int_to_ptr.vmem [resolvable:$true] %s20
      %23 = dma.hbm_to_vmem [thread:$0]  %s18, 128, %s21, [#allocation4]
    $region5: #{tpu_custom_call.1} parent=1 // pred_fallthru
      _
    // Predicated region
    $region6: #{tpu_custom_call.1} parent=1 // pred_check
      _
    $region7: #{tpu_custom_call.1} parent=1 // pred_check_branch
      %25 = sbr.rel (0) target = $region9
    $region8: #{tpu_custom_call.1} parent=1 // pred_region
      %s26 = sadd.s32 0, 0
      %s28 = ssub.s32 128, 128
      %29 = vsyncadd [#allocation7], %s28
      %s30 = smul.addr %s26, 128
      %s31 = scalar_lea.hbm %s1, %s30
      %s33 = sshll.u32 [#allocation6], 4
      %s34 = int_to_ptr.vmem [resolvable:$true] %s33
      %36 = dma.hbm_to_vmem [thread:$0]  %s31, 128, %s34, [#allocation7]
    $region9: #{tpu_custom_call.1} parent=1 // pred_fallthru
      _
    // Predicated region
    $region10: #{tpu_custom_call.1} parent=1 // pred_check
      _
    $region11: #{tpu_custom_call.1} parent=1 // pred_check_branch
      %38 = sbr.rel (0) target = $region13
    $region12: #{tpu_custom_call.1} parent=1 // pred_region
      _
    $region13: #{tpu_custom_call.1} parent=1 // pred_fallthru
      _
    // Predicated region
    $region14: #{tpu_custom_call.1} parent=1 // pred_check
      _
    $region15: #{tpu_custom_call.1} parent=1 // pred_check_branch
      %40 = sbr.rel (0) target = $region17
    $region16: #{tpu_custom_call.1} parent=1 // pred_region
      %41 = dma.done [#allocation4], 128
    $region17: #{tpu_custom_call.1} parent=1 // pred_fallthru
      _
    // Predicated region
    $region18: #{tpu_custom_call.1} parent=1 // pred_check
      _
    $region19: #{tpu_custom_call.1} parent=1 // pred_check_branch
      %43 = sbr.rel (0) target = $region21
    $region20: #{tpu_custom_call.1} parent=1 // pred_region
      %44 = dma.done [#allocation7], 128
    $region21: #{tpu_custom_call.1} parent=1 // pred_fallthru
      _
    %s45 = sadd.s32 0, 0
    %s46 = sadd.s32 0, 0
    %p47 = scmp.eq.s32.totalorder 0, 0
    // Predicated region
    $region22: #{tpu_custom_call.1} parent=1 // pred_check
      %p48 = pneg %p47
    $region23: #{tpu_custom_call.1} parent=1 // pred_check_branch
      %50 = sbr.rel (%p48) target = $region25
    $region24: #{tpu_custom_call.1} parent=1 // pred_region
      %vm51 = vcmask 0
      %52 = vst.msk [vmem:[#allocation2] sm:$0x1] %vm51, 0.0
    $region25: #{tpu_custom_call.1} parent=1 // pred_fallthru
      _
    %v53 = vld [vmem:[#allocation3] sm:$0xff]
    %v54 = vld [vmem:[#allocation6] sm:$0xff]
    %v55 = vld [vmem:[%s2] sm:$0x1]
    %56 = vmax.xlane.f32.xlu0 %v53
    %v57 = vpop.xlane.xlu0 %56
    %v58 = vsub.f32 %v53, %v57
    %v59 = vmul.f32 %v58, 1.442695
    %v60 = vpow.pop %v59
    %61 = vadd.xlane.f32.xlu0 %v60
    %v62 = vpop.xlane.xlu0 %61
    %v63 = vlog2.pop %v62
    %v64 = vmul.f32 %v63, 0.6931472
    %v65 = vsub.f32 %v58, %v64
    %v66 = vsub.f32 0.0, %v54
    %v67 = vmul.f32 %v66, %v65
    %v69 = vlaneseq
    %v70 = vshrl.u32 %v69, 7
    %v71 = vsub.s32 0, %v70
    %v72 = vrot.slane %v55, %v71
    %v74 = vmul.f32 %v67, %v72
    %75 = vadd.xlane.f32.xlu0 %v74
    %v76 = vpop.xlane.xlu0 %75
    %v77 = vld [vmem:[#allocation2] sm:$0x1]
    %v78 = vrot.slane %v76, 4
    %v79 = vadd.f32 %v76, %v78
    %v80 = vrot.slane %v79, 2
    %v81 = vadd.f32 %v79, %v80
    %v82 = vrot.slane %v81, 1
    %v83 = vadd.f32 %v81, %v82
    %v84 = vadd.f32 %v77, %v83
    %vm85 = vcmask 0
    %86 = vst.msk [vmem:[#allocation2] sm:$0x1] %vm85, %v84
    // Predicated region
    $region26: #{tpu_custom_call.1} parent=1 // pred_check
      %p87 = pneg %p47
    $region27: #{tpu_custom_call.1} parent=1 // pred_check_branch
      %89 = sbr.rel (%p87) target = $region29
    $region28: #{tpu_custom_call.1} parent=1 // pred_region
      %v90 = vld [vmem:[#allocation2] sm:$0x1]
      %91 = vst.msk [vmem:[#allocation8] sm:$0x1] %vm85, %v90
    $region29: #{tpu_custom_call.1} parent=1 // pred_fallthru
      _
    // Predicated region
    $region30: #{tpu_custom_call.1} parent=1 // pred_check
      _
    $region31: #{tpu_custom_call.1} parent=1 // pred_check_branch
      %93 = sbr.rel (0) target = $region33
    $region32: #{tpu_custom_call.1} parent=1 // pred_region
      %s95 = ssub.s32 16, 16
      %96 = vsyncadd [#allocation5], %s95
      %s98 = sshll.u32 [#allocation8], 4
      %s99 = int_to_ptr.vmem [resolvable:$true] %s98
      %101 = dma.vmem_to_hbm [thread:$0]  %s99, 16, %s3, [#allocation5]
    $region33: #{tpu_custom_call.1} parent=1 // pred_fallthru
      _
    // Predicated region
    $region34: #{tpu_custom_call.1} parent=1 // pred_check
      _
    $region35: #{tpu_custom_call.1} parent=1 // pred_check_branch
      %103 = sbr.rel (0) target = $region37
    $region36: #{tpu_custom_call.1} parent=1 // pred_region
      %104 = dma.done [#allocation5], 16
    $region37: #{tpu_custom_call.1} parent=1 // pred_fallthru
      _
    %105 = vsyncpa [#allocation4], 1
    %106 = vsyncpa [#allocation7], 1
    %107 = vsyncpa [#allocation5], 1

</llo_original>
